<compile_context>
chip_gen: v5e
topology: v5e:2x2
jax: 0.10.0
libtpu: 0.0.40
codegen_flags: <defaults>
</compile_context>

<pallas_src>
import math

import jax
import jax.numpy as jnp
from jax import lax
from jax.experimental import pallas as pl
from jax.experimental.pallas import tpu as pltpu


SCAN_CHUNK = 128      # timesteps per scan grid step (keep modest for v7x; can
                      # be raised to 256 on v5e/v6e which have 128 MiB VMEM)
ROW_TILE = 512        # target row tile for the matmul-family kernels
VMEM_LIMIT = 48 * 1024 * 1024   # explicit scoped-VMEM budget, safe on all gens


def _pick_tile(m, target):
    """Largest divisor of m that is <= target and a multiple of 8 (else m)."""
    # TODO(synk): pad awkward row counts to a tile multiple instead of falling
    #             back to one huge block (matters for odd B*H*W / L values).
    if m <= target:
        return m
    for c in range(min(target, m), 7, -1):
        if m % c == 0 and c % 8 == 0:
            return c
    return m


def _unroll(t):
    for c in (8, 4, 2):
        if t % c == 0:
            return c
    return 1


# ----------------------------------------------------------------------------
# Row-tiled fused matmul / LayerNorm kernels (bf16 MXU operands, f32 accum)
# ----------------------------------------------------------------------------

def _mm_bias_res_kernel(x_ref, w_ref, b_ref, r_ref, o_ref):
    o_ref[...] = (jnp.dot(x_ref[...].astype(w_ref.dtype), w_ref[...],
                          preferred_element_type=jnp.float32)
                  + b_ref[...] + r_ref[...])


def _mm_bias_ln_kernel(x_ref, w_ref, b_ref, g_ref, beta_ref, o_ref):
    h = jnp.dot(x_ref[...].astype(w_ref.dtype), w_ref[...],
                preferred_element_type=jnp.float32) + b_ref[...]
    mu = jnp.mean(h, axis=-1, keepdims=True)
    hc = h - mu
    var = jnp.mean(hc * hc, axis=-1, keepdims=True)
    o_ref[...] = hc * lax.rsqrt(var + 1e-5) * g_ref[...] + beta_ref[...]


def _ln_mm_kernel(x_ref, g_ref, b_ref, w_ref, o_ref):
    x = x_ref[...]
    mu = jnp.mean(x, axis=-1, keepdims=True)
    xc = x - mu
    var = jnp.mean(xc * xc, axis=-1, keepdims=True)
    xn = xc * lax.rsqrt(var + 1e-5) * g_ref[...] + b_ref[...]
    o_ref[...] = jnp.dot(xn.astype(w_ref.dtype), w_ref[...],
                         preferred_element_type=jnp.float32)


def _gate_out_kernel(y_ref, z_ref, g_ref, b_ref, w_ref, r_ref, o_ref):
    # o = residual + (LN(y) * SiLU(z)) @ W_out
    y = y_ref[...]
    mu = jnp.mean(y, axis=-1, keepdims=True)
    yc = y - mu
    var = jnp.mean(yc * yc, axis=-1, keepdims=True)
    yn = yc * lax.rsqrt(var + 1e-5) * g_ref[...] + b_ref[...]
    z = z_ref[...]
    gate = yn * (z * jax.nn.sigmoid(z))
    o_ref[...] = r_ref[...] + jnp.dot(gate.astype(w_ref.dtype), w_ref[...],
                                      preferred_element_type=jnp.float32)


def _call_rowtiled(kernel, args, row_flags, out_cols, target=ROW_TILE):
    """Call `kernel` with a grid over the row (M) dim of the row-flagged args."""
    m = args[0].shape[0]
    tm = _pick_tile(m, target)
    specs = []
    for a, is_row in zip(args, row_flags):
        if is_row:
            specs.append(pl.BlockSpec((tm, a.shape[1]), lambda i: (i, 0)))
        else:
            specs.append(pl.BlockSpec(a.shape,
                                      lambda i, nd=a.ndim: (0,) * nd))
    # TODO(synk): single-buffer the constant-index weight blocks
    #             (pipeline_mode=pl.Buffered(1)) to save VMEM on v7x.
    return pl.pallas_call(
        kernel,
        out_shape=jax.ShapeDtypeStruct((m, out_cols), jnp.float32),
        grid=(m // tm,),
        in_specs=specs,
        out_specs=pl.BlockSpec((tm, out_cols), lambda i: (i, 0)),
        compiler_params=pltpu.CompilerParams(
            dimension_semantics=("parallel",),
            vmem_limit_bytes=VMEM_LIMIT),
    )(*args)


def matmul_bias_res(x, w, b, res):
    n = w.shape[1]
    bb = jnp.zeros((1, n), jnp.float32) if b is None else \
        b.reshape(1, n).astype(jnp.float32)
    return _call_rowtiled(_mm_bias_res_kernel, [x, w, bb, res],
                          [True, False, False, True], n)


def matmul_ln(x, w, b, g, beta):
    """LayerNorm(x @ w + b) with gamma/beta, fused."""
    n = w.shape[1]
    bb = jnp.zeros((1, n), jnp.float32) if b is None else \
        b.reshape(1, n).astype(jnp.float32)
    return _call_rowtiled(
        _mm_bias_ln_kernel,
        [x, w, bb, g.reshape(1, n), beta.reshape(1, n)],
        [True, False, False, False, False], n)


def ln_matmul(x, g, b, w):
    """LayerNorm(x) @ w, fused."""
    c = x.shape[1]
    n = w.shape[1]
    return _call_rowtiled(
        _ln_mm_kernel,
        [x, g.reshape(1, c), b.reshape(1, c), w],
        [True, False, False, False], n)


def gate_out_proj(y, z, g, b, w, res):
    """residual + (LN(y) * SiLU(z)) @ w, fused."""
    c = y.shape[1]
    n = w.shape[1]
    return _call_rowtiled(
        _gate_out_kernel,
        [y, z, g.reshape(1, c), b.reshape(1, c), w, res],
        [True, True, False, False, False, True], n)


# ----------------------------------------------------------------------------
# Depthwise 3x3 conv + SiLU (reads padded input once, fused activation)
# ----------------------------------------------------------------------------

def _dwconv_silu_kernel(x_ref, w_ref, b_ref, o_ref):
    # x_ref: (Hp, Wp, C) padded image; w_ref: (9, C); b_ref: (1, C)
    H, W, _ = o_ref.shape
    acc = x_ref[0:H, 0:W, :] * w_ref[0:1, :]
    for di in range(3):
        for dj in range(3):
            if di == 0 and dj == 0:
                continue
            acc = acc + x_ref[di:di + H, dj:dj + W, :] * \
                w_ref[di * 3 + dj:di * 3 + dj + 1, :]
    acc = acc + b_ref[...]
    o_ref[...] = acc * jax.nn.sigmoid(acc)


def depthwise_conv3x3_silu(x, w9, b):
    """Depthwise 3x3, stride 1, zero pad 1, fused SiLU.  x: (B,H,W,C)."""
    B, H, W, C = x.shape
    xp = jnp.pad(x, ((0, 0), (1, 1), (1, 1), (0, 0)))
    # TODO(synk): tile over H strips with a 2-row halo (and fold W into lanes
    #             when C < 128) for large resolutions; whole-image blocks are
    #             fine at this test size.
    return pl.pallas_call(
        _dwconv_silu_kernel,
        out_shape=jax.ShapeDtypeStruct((B, H, W, C), jnp.float32),
        grid=(B,),
        in_specs=[pl.BlockSpec((None, H + 2, W + 2, C), lambda bi: (bi, 0, 0, 0)),
                  pl.BlockSpec((9, C), lambda bi: (0, 0)),
                  pl.BlockSpec((1, C), lambda bi: (0, 0))],
        out_specs=pl.BlockSpec((None, H, W, C), lambda bi: (bi, 0, 0, 0)),
        compiler_params=pltpu.CompilerParams(
            dimension_semantics=("parallel",),
            vmem_limit_bytes=VMEM_LIMIT),
    )(xp, w9, b.reshape(1, C))


# ----------------------------------------------------------------------------
# Dense convs (patch embed / layer conv / downsample) via fused matmul kernels
# ----------------------------------------------------------------------------

def patch_embed(x, p, patch_size):
    # Conv2d(in_chans, embed, patch, patch) + LayerNorm; stride == kernel, so
    # the "im2col" is a pure reorder (no data blow-up).
    B, H, W, Cin = x.shape
    ph = patch_size
    Ho, Wo = H // ph, W // ph
    cols = jnp.concatenate(
        [x[:, i::ph, j::ph, :] for i in range(ph) for j in range(ph)], axis=-1)
    out = matmul_ln(cols.reshape(B * Ho * Wo, ph * ph * Cin),
                    p["proj_w2"], p["proj_b"], p["norm_w"], p["norm_b"])
    return out.reshape(B, Ho, Wo, -1)


def conv3x3_s1_residual(x, w2, b, res):
    # Conv2d(dim, dim, 3, 1, 1) + bias + layer residual, fused into one matmul.
    # TODO(synk): build the 3x3 window accumulation inside a Pallas kernel from
    #             the padded image to avoid the 9x im2col blow-up in HBM.
    B, H, W, Cin = x.shape
    Cout = w2.shape[1]
    xp = jnp.pad(x, ((0, 0), (1, 1), (1, 1), (0, 0)))
    cols = jnp.concatenate(
        [xp[:, i:i + H, j:j + W, :] for i in range(3) for j in range(3)],
        axis=-1)
    out = matmul_bias_res(cols.reshape(B * H * W, 9 * Cin), w2, b,
                          res.reshape(B * H * W, Cout))
    return out.reshape(B, H, W, Cout)


def downsample_v2(x, lp):
    # Conv2d(dim, out_dim, 3, 2, 1, bias=False, reflect) + LayerNorm, fused.
    B, H, W, Cin = x.shape
    xp = jnp.pad(x, ((0, 0), (1, 1), (1, 1), (0, 0)), mode="reflect")
    Ho = (H + 2 - 3) // 2 + 1
    Wo = (W + 2 - 3) // 2 + 1
    cols = jnp.concatenate(
        [xp[:, i:i + (Ho - 1) * 2 + 1:2, j:j + (Wo - 1) * 2 + 1:2, :]
         for i in range(3) for j in range(3)], axis=-1)
    out = matmul_ln(cols.reshape(B * Ho * Wo, 9 * Cin), lp["down_w2"], None,
                    lp["down_norm_w"], lp["down_norm_b"])
    return out.reshape(B, Ho, Wo, -1)


# ----------------------------------------------------------------------------
# Selective scan: 4 directions fused along lanes, projection fused in-kernel
# ----------------------------------------------------------------------------

def _scan_kernel(x0f_ref, x1f_ref, x0r_ref, x1r_ref, rev_ref,
                 w_ref, sel_ref, A_ref, bias_ref, D_ref,
                 y_ref, dA_scr, dBu_scr, h_scr):
    # x*_ref: (T, d_inner);  rev_ref: (T, T) flip matrix
    # w_ref : (Ctot, Ctot + 2*PNK) bf16   (dt_proj folded into x_proj)
    # sel_ref: (PNK, N*Ctot) one-hot state-expansion selector
    # A_ref : (N, Ctot);  bias_ref, D_ref: (1, Ctot)
    # scratch: dA/dBu (T, N, Ctot) f32; h (N, Ctot) f32 carried across chunks
    N, Ctot = A_ref.shape
    T = x0f_ref.shape[0]
    PNK = sel_ref.shape[0]

    # ---- assemble the fused-direction input u for this chunk (reverse dirs
    #      fetched at mirrored chunk index, flipped in time via a tiny MXU
    #      permutation matmul; no 4x xs_cat materialization in HBM) ----
    rev = rev_ref[...]
    x2 = jnp.dot(rev, x0r_ref[...], preferred_element_type=jnp.float32)
    x3 = jnp.dot(rev, x1r_ref[...], preferred_element_type=jnp.float32)
    u = jnp.concatenate([x0f_ref[...], x1f_ref[...], x2, x3], axis=-1)

    # ---- fused projection: [dt | B | C] for all 4 directions in one matmul --
    proj = jnp.dot(u.astype(w_ref.dtype), w_ref[...],
                   preferred_element_type=jnp.float32)       # (T, Ctot + 2*PNK)
    dt = jax.nn.softplus(proj[:, :Ctot] + bias_ref[...])     # (T, Ctot)
    du = dt * u
    bq = proj[:, Ctot:Ctot + PNK]                            # (T, PNK)
    cq = proj[:, Ctot + PNK:]                                # (T, PNK)

    # ---- B/C state expansion on the MXU (one-hot selector) ----
    bexp = jnp.dot(bq, sel_ref[...], preferred_element_type=jnp.float32)
    cexp = jnp.dot(cq, sel_ref[...], preferred_element_type=jnp.float32)

    # ---- vectorized, h-independent precompute stored timestep-major so the
    #      serial loop does one dense (N, Ctot) load/store per step ----
    for n in range(N):
        dA_scr[:, n, :] = jnp.exp(dt * A_ref[n:n + 1, :])
        dBu_scr[:, n, :] = du * bexp[:, n * Ctot:(n + 1) * Ctot]

    # carried state; reset at the first L-chunk of each batch.  Relies on the
    # grid running b-outer / l-inner with scratch persisting across l steps.
    @pl.when(pl.program_id(1) == 0)
    def _():
        h_scr[...] = jnp.zeros_like(h_scr)

    # ---- serial recurrence: dense (N, Ctot) state, one mul-add + one dense
    #      store per step; the history overwrites dBu in place ----
    def step(t, h):
        h = dA_scr[t] * h + dBu_scr[t]
        dBu_scr[t] = h
        return h

    h_scr[...] = lax.fori_loop(0, T, step, h_scr[...], unroll=_unroll(T))

    # ---- epilogue: y = sum_n C_n * h_n + D * u (vectorized over the chunk) --
    y = D_ref[...] * u
    for n in range(N):
        y = y + cexp[:, n * Ctot:(n + 1) * Ctot] * dBu_scr[:, n, :]
    y_ref[...] = y


def selective_scan_fused(x0, x1, w_eff, sel, A_cat, dtb_cat, D_cat,
                         chunk=SCAN_CHUNK):
    """x0, x1: (B, L, d_inner) forward / transposed scan inputs."""
    Bb, L, d_inner = x0.shape
    N, Ctot = A_cat.shape
    T = _pick_tile(L, chunk)
    NL = L // T
    rev = jnp.flipud(jnp.eye(T, dtype=jnp.float32))

    x_fwd = pl.BlockSpec((None, T, d_inner), lambda b, l: (b, l, 0))
    x_rev = pl.BlockSpec((None, T, d_inner), lambda b, l: (b, NL - 1 - l, 0))

    def cspec(shape):
        return pl.BlockSpec(shape, lambda b, l, nd=len(shape): (0,) * nd)

    return pl.pallas_call(
        _scan_kernel,
        out_shape=jax.ShapeDtypeStruct((Bb, L, Ctot), jnp.float32),
        grid=(Bb, NL),
        in_specs=[x_fwd, x_fwd, x_rev, x_rev,
                  cspec(rev.shape), cspec(w_eff.shape), cspec(sel.shape),
                  cspec(A_cat.shape), cspec(dtb_cat.shape), cspec(D_cat.shape)],
        out_specs=pl.BlockSpec((None, T, Ctot), lambda b, l: (b, l, 0)),
        scratch_shapes=[pltpu.VMEM((T, N, Ctot), jnp.float32),
                        pltpu.VMEM((T, N, Ctot), jnp.float32),
                        pltpu.VMEM((N, Ctot), jnp.float32)],
        compiler_params=pltpu.CompilerParams(
            dimension_semantics=("parallel", "arbitrary"),
            vmem_limit_bytes=VMEM_LIMIT),
    )(x0, x1, x0, x1, rev, w_eff, sel, A_cat, dtb_cat, D_cat)


# ----------------------------------------------------------------------------
# Model (glue + Pallas kernel calls)
# ----------------------------------------------------------------------------

def vss_block(x, bp):
    """x + SS2D(LN(x)); DropPath / Dropout are identity at inference."""
    B, H, W, Cm = x.shape
    p = bp["ss2d"]
    d_inner = p["D_cat"].shape[1] // 4
    L = H * W

    x_flat = x.reshape(B * L, Cm)

    # LN1 + in_proj (bias=False), fused; split into x / z
    xz = ln_matmul(x_flat, bp["ln1_w"], bp["ln1_b"], p["in_proj_w_bf"])
    xx = xz[:, :d_inner].reshape(B, H, W, d_inner)
    z = xz[:, d_inner:]

    # depthwise 3x3 conv + SiLU (fused)
    xx = depthwise_conv3x3_silu(xx, p["dw_w9"], p["dw_b"])

    # cross-scan inputs: row-major and column-major traversals (the two
    # reversed directions are generated inside the scan kernel).
    x0 = xx.reshape(B, L, d_inner)
    x1 = jnp.transpose(xx, (0, 2, 1, 3)).reshape(B, L, d_inner)

    ys = selective_scan_fused(x0, x1, p["w_eff"], p["sel"], p["A_cat"],
                              p["dtb_cat"], p["D_cat"])       # (B, L, 4*d_inner)

    # merge the 4 directional scans (matches VMamba forward_core)
    d = d_inner
    y0 = ys[..., 0:d]
    y1 = ys[..., d:2 * d]
    y2 = ys[..., 2 * d:3 * d][:, ::-1]
    y3 = ys[..., 3 * d:4 * d][:, ::-1]
    wh = jnp.transpose(y1.reshape(B, W, H, d), (0, 2, 1, 3)).reshape(B, L, d)
    invwh = jnp.transpose(y3.reshape(B, W, H, d), (0, 2, 1, 3)).reshape(B, L, d)
    y = (y0 + y2 + wh + invwh).reshape(B * L, d)

    # out_norm LN + SiLU(z) gate + out_proj (bias=False) + block residual
    out = gate_out_proj(y, z, p["out_norm_w"], p["out_norm_b"],
                        p["out_proj_w_bf"], x_flat)
    return out.reshape(B, H, W, Cm)


def layer_blocks(x, lp):
    h = x
    for bp in lp["blocks"]:
        h = vss_block(h, bp)
    # Permute -> Conv2d(dim, dim, 3, 1, 1) -> Permute with the layer residual
    # (modal = blocks(modal) + modal) fused into the conv matmul kernel.
    return conv3x3_s1_residual(h, lp["conv_w2"], lp["conv_b"], x)


def vssm_forward(params, x_nchw, patch_size=4):
    """VSSM.forward with upsample_option=False -> returns (modal, outs)."""
    # TODO(synk): the upsample_option=True branch (forward_features_up) is not
    #             implemented; forward here matches upsample_option=False.
    x = jnp.transpose(x_nchw, (0, 2, 3, 1)).astype(jnp.float32)   # NCHW -> NHWC
    modal = patch_embed(x, params["patch_embed"], patch_size)
    outs = []
    num_layers = len(params["layers"])
    for i, lp in enumerate(params["layers"]):
        outs.append(modal)
        modal = layer_blocks(modal, lp)          # includes the +modal residual
        if i < num_layers - 1:
            modal = downsample_v2(modal, lp)
    return modal, outs


# ----------------------------------------------------------------------------
# One-time parameter preprocessing (weight folding / reshaping / bf16 casting)
# ----------------------------------------------------------------------------

def prepare_params(params):
    K = 4
    out = dict(params)

    pe = dict(params["patch_embed"])
    w = pe["proj_w"]                                   # (embed, Cin, ph, pw)
    pe["proj_w2"] = jnp.transpose(w, (2, 3, 1, 0)).reshape(
        -1, w.shape[0]).astype(jnp.bfloat16)
    out["patch_embed"] = pe

    layers = []
    for lp in params["layers"]:
        lp2 = dict(lp)
        cw = lp["conv_w"]                              # (Cout, Cin, 3, 3)
        lp2["conv_w2"] = jnp.transpose(cw, (2, 3, 1, 0)).reshape(
            9 * cw.shape[1], cw.shape[0]).astype(jnp.bfloat16)
        if "down_conv_w" in lp:
            dwn = lp["down_conv_w"]
            lp2["down_w2"] = jnp.transpose(dwn, (2, 3, 1, 0)).reshape(
                9 * dwn.shape[1], dwn.shape[0]).astype(jnp.bfloat16)

        blocks = []
        for bp in lp["blocks"]:
            bp2 = dict(bp)
            p = dict(bp["ss2d"])
            d_inner = p["Ds"].shape[1]
            N = p["A_T"].shape[1]
            Ctot = K * d_inner
            NK = N * K
            PNK = ((NK + 127) // 128) * 128
            dt_rank = p["dt_proj_w"].shape[1]

            # dt_proj folded into x_proj; one block-diagonal projection weight
            # producing [dt (Ctot) | B (padded to PNK) | C (padded to PNK)].
            wdt_bd = jnp.zeros((Ctot, Ctot), jnp.float32)
            wb_all = jnp.zeros((Ctot, PNK), jnp.float32)
            wc_all = jnp.zeros((Ctot, PNK), jnp.float32)
            for k in range(K):
                xw = p["x_proj_w"][k]                  # (d_inner, R + 2N)
                wdt = xw[:, :dt_rank] @ p["dt_proj_w"][k]
                wb = xw[:, dt_rank:dt_rank + N]
                wc = xw[:, dt_rank + N:dt_rank + 2 * N]
                rs = slice(k * d_inner, (k + 1) * d_inner)
                wdt_bd = wdt_bd.at[rs, rs].set(wdt)
                wb_all = wb_all.at[rs, k:NK:K].set(wb)   # column n*K + k
                wc_all = wc_all.at[rs, k:NK:K].set(wc)
            p["w_eff"] = jnp.concatenate(
                [wdt_bd, wb_all, wc_all], axis=1).astype(jnp.bfloat16)

            # one-hot selector: sel[n*K + k, n*Ctot + c] = 1 iff c//d_inner == k
            cidx = jnp.arange(N * Ctot)
            tgt = (cidx // Ctot) * K + (cidx % Ctot) // d_inner
            p["sel"] = (jnp.arange(PNK)[:, None] == tgt[None, :]
                        ).astype(jnp.float32)

            p["A_cat"] = jnp.transpose(p["A_T"], (1, 0, 2)).reshape(N, Ctot)
            p["dtb_cat"] = p["dt_proj_b"].reshape(1, Ctot)
            p["D_cat"] = p["Ds"].reshape(1, Ctot)
            p["dw_w9"] = jnp.transpose(p["dw_w"][:, 0], (1, 2, 0)).reshape(
                9, d_inner)
            p["in_proj_w_bf"] = p["in_proj_w"].astype(jnp.bfloat16)
            p["out_proj_w_bf"] = p["out_proj_w"].astype(jnp.bfloat16)

            bp2["ss2d"] = p
            blocks.append(bp2)
        lp2["blocks"] = blocks
        layers.append(lp2)
    out["layers"] = layers
    return out


# ----------------------------------------------------------------------------
# Deterministic parameter initialization (synthetic, matches module shapes)
# ----------------------------------------------------------------------------

def init_vssm_params(key, patch_size=4, in_chans=3, depths=(1, 1),
                     dims=(16, 32), d_state=4):
    keys = iter(jax.random.split(key, 512))

    def nrm(shape, std):
        return std * jax.random.normal(next(keys), shape, jnp.float32)

    params = {}
    embed_dim = dims[0]
    params["patch_embed"] = dict(
        proj_w=nrm((embed_dim, in_chans, patch_size, patch_size), 0.1),
        proj_b=jnp.zeros((embed_dim,), jnp.float32),
        norm_w=jnp.ones((embed_dim,), jnp.float32),
        norm_b=jnp.zeros((embed_dim,), jnp.float32),
    )

    layers = []
    num_layers = len(depths)
    for i in range(num_layers):
        dim = dims[i]
        d_inner = 2 * dim
        dt_rank = math.ceil(dim / 16)
        blocks = []
        for _ in range(depths[i]):
            # A_log = log(arange(1, N+1)) per channel => A = -arange(1, N+1)
            A_T = -jnp.tile(
                jnp.arange(1, d_state + 1, dtype=jnp.float32)[None, :, None],
                (4, 1, d_inner))                               # (4, N, d_inner)
            ss2d = dict(
                in_proj_w=nrm((dim, 2 * d_inner), 0.02),
                dw_w=nrm((d_inner, 1, 3, 3), 0.1),
                dw_b=jnp.zeros((d_inner,), jnp.float32),
                x_proj_w=nrm((4, d_inner, dt_rank + 2 * d_state), 0.02),
                dt_proj_w=nrm((4, dt_rank, d_inner), 0.1),
                dt_proj_b=nrm((4, d_inner), 0.1),
                A_T=A_T,
                Ds=jnp.ones((4, d_inner), jnp.float32),
                out_norm_w=jnp.ones((d_inner,), jnp.float32),
                out_norm_b=jnp.zeros((d_inner,), jnp.float32),
                out_proj_w=nrm((d_inner, dim), 0.02),
            )
            blocks.append(dict(ln1_w=jnp.ones((dim,), jnp.float32),
                               ln1_b=jnp.zeros((dim,), jnp.float32),
                               ss2d=ss2d))
        layer = dict(blocks=blocks,
                     conv_w=nrm((dim, dim, 3, 3), 0.05),
                     conv_b=jnp.zeros((dim,), jnp.float32))
        if i < num_layers - 1:
            layer["down_conv_w"] = nrm((dims[i + 1], dim, 3, 3), 0.05)
            layer["down_norm_w"] = jnp.ones((dims[i + 1],), jnp.float32)
            layer["down_norm_b"] = jnp.zeros((dims[i + 1],), jnp.float32)
        layers.append(layer)
    params["layers"] = layers
    return params


# TODO(synk): Dropout / DropPath stochastic branches (training mode) are not
# modeled; forward uses eval-mode (identity) semantics.

if __name__ == "__main__":
    key = jax.random.PRNGKey(0)
    pkey, xkey = jax.random.split(key)
    # Small config consistent with the module: patch_size=4, in_chans=3,
    # depths=[1,1], dims=[16,32], d_state=4.
    raw_params = init_vssm_params(pkey, patch_size=4, in_chans=3,
                                  depths=(1, 1), dims=(16, 32), d_state=4)
    params = prepare_params(raw_params)
    x = jax.random.normal(xkey, (2, 3, 16, 16), jnp.float32)      # NCHW input
    modal, outs = vssm_forward(params, x, patch_size=4)
    jax.block_until_ready(modal)
    for o in outs:
        jax.block_until_ready(o)
    assert modal.shape == (2, 2, 2, 32)
    assert outs[0].shape == (2, 4, 4, 16) and outs[1].shape == (2, 2, 2, 32)
    print("KERNEL_OK")
</pallas_src>

<mosaic_0001>
module attributes {stable_mosaic.version = 11 : i64} {
  func.func @_mm_bias_ln_kernel(%arg0: i32, %arg1: memref<32x48xf32, #tpu.memory_space<vmem>>, %arg2: memref<48x16xbf16, #tpu.memory_space<vmem>>, %arg3: memref<1x16xf32, #tpu.memory_space<vmem>>, %arg4: memref<1x16xf32, #tpu.memory_space<vmem>>, %arg5: memref<1x16xf32, #tpu.memory_space<vmem>>, %arg6: memref<32x16xf32, #tpu.memory_space<vmem>>) attributes {dimension_semantics = [#tpu.dimension_semantics<parallel>], iteration_bounds = array<i64: 1>, scalar_prefetch = 0 : i64, scratch_operands = 0 : i64, tpu.core_type = #tpu.core_type<tc>, window_params = [{transform_indices = @transform_0, window_bounds = array<i64: 32, 48>}, {pipeline_mode = #tpu.pipeline_mode<synchronous>, transform_indices = @transform_1, window_bounds = array<i64: 48, 16>}, {pipeline_mode = #tpu.pipeline_mode<synchronous>, transform_indices = @transform_2, window_bounds = array<i64: 1, 16>}, {pipeline_mode = #tpu.pipeline_mode<synchronous>, transform_indices = @transform_3, window_bounds = array<i64: 1, 16>}, {pipeline_mode = #tpu.pipeline_mode<synchronous>, transform_indices = @transform_4, window_bounds = array<i64: 1, 16>}, {transform_indices = @transform_5, window_bounds = array<i64: 32, 16>}]} {
    %c0 = arith.constant 0 : index
    %c0_0 = arith.constant 0 : index
    %0 = vector.load %arg1[%c0, %c0_0] : memref<32x48xf32, #tpu.memory_space<vmem>>, vector<32x48xf32>
    %1 = arith.truncf %0 : vector<32x48xf32> to vector<32x48xbf16>
    %c0_1 = arith.constant 0 : index
    %c0_2 = arith.constant 0 : index
    %2 = vector.load %arg2[%c0_1, %c0_2] : memref<48x16xbf16, #tpu.memory_space<vmem>>, vector<48x16xbf16>
    %cst = arith.constant dense<0.000000e+00> : vector<32x16xf32>
    %3 = tpu.matmul %1, %2, %cst {dimension_numbers = #tpu.dot_dimension_numbers<[1], [0], [0], [1], [0, 0, 1, 1], [], []>} : vector<32x48xbf16>, vector<48x16xbf16>, vector<32x16xf32> -> vector<32x16xf32>
    %c0_3 = arith.constant 0 : index
    %c0_4 = arith.constant 0 : index
    %4 = vector.load %arg3[%c0_3, %c0_4] : memref<1x16xf32, #tpu.memory_space<vmem>>, vector<1x16xf32>
    %5 = vector.broadcast %4 : vector<1x16xf32> to vector<32x16xf32>
    %6 = arith.addf %3, %5 : vector<32x16xf32>
    %cst_5 = arith.constant dense<0.000000e+00> : vector<32xf32>
    %7 = vector.multi_reduction <add>, %6, %cst_5 [1] : vector<32x16xf32> to vector<32xf32>
    %8 = vector.shape_cast %7 : vector<32xf32> to vector<32x1xf32>
    %cst_6 = arith.constant 1.600000e+01 : f32
    %9 = vector.broadcast %cst_6 : f32 to vector<32x1xf32>
    %10 = arith.divf %8, %9 : vector<32x1xf32>
    %11 = vector.broadcast %10 : vector<32x1xf32> to vector<32x16xf32>
    %12 = arith.subf %6, %11 : vector<32x16xf32>
    %13 = arith.mulf %12, %12 : vector<32x16xf32>
    %cst_7 = arith.constant dense<0.000000e+00> : vector<32xf32>
    %14 = vector.multi_reduction <add>, %13, %cst_7 [1] : vector<32x16xf32> to vector<32xf32>
    %15 = vector.shape_cast %14 : vector<32xf32> to vector<32x1xf32>
    %cst_8 = arith.constant 1.600000e+01 : f32
    %16 = vector.broadcast %cst_8 : f32 to vector<32x1xf32>
    %17 = arith.divf %15, %16 : vector<32x1xf32>
    %cst_9 = arith.constant 9.99999974E-6 : f32
    %18 = vector.broadcast %cst_9 : f32 to vector<32x1xf32>
    %19 = arith.addf %17, %18 : vector<32x1xf32>
    %20 = math.rsqrt %19 : vector<32x1xf32>
    %21 = vector.broadcast %20 : vector<32x1xf32> to vector<32x16xf32>
    %22 = arith.mulf %12, %21 : vector<32x16xf32>
    %c0_10 = arith.constant 0 : index
    %c0_11 = arith.constant 0 : index
    %23 = vector.load %arg4[%c0_10, %c0_11] : memref<1x16xf32, #tpu.memory_space<vmem>>, vector<1x16xf32>
    %24 = vector.broadcast %23 : vector<1x16xf32> to vector<32x16xf32>
    %25 = arith.mulf %22, %24 : vector<32x16xf32>
    %c0_12 = arith.constant 0 : index
    %c0_13 = arith.constant 0 : index
    %26 = vector.load %arg5[%c0_12, %c0_13] : memref<1x16xf32, #tpu.memory_space<vmem>>, vector<1x16xf32>
    %27 = vector.broadcast %26 : vector<1x16xf32> to vector<32x16xf32>
    %28 = arith.addf %25, %27 : vector<32x16xf32>
    %c0_14 = arith.constant 0 : index
    %c0_15 = arith.constant 0 : index
    %29 = vector.load %arg6[%c0_14, %c0_15] : memref<32x16xf32, #tpu.memory_space<vmem>>, vector<32x16xf32>
    tpu.vector_store %arg6[%c0_14, %c0_15], %28 {strides = array<i32>} : memref<32x16xf32, #tpu.memory_space<vmem>>, vector<32x16xf32>,
    return
  }
  func.func @transform_0(%arg0: i32) -> (i32, i32) {
    %c0_i32 = arith.constant 0 : i32
    %c0_i32_0 = arith.constant 0 : i32
    return %arg0, %c0_i32 : i32, i32
  }
  func.func @transform_1(%arg0: i32) -> (i32, i32) {
    %c0_i32 = arith.constant 0 : i32
    %c0_i32_0 = arith.constant 0 : i32
    %c0_i32_1 = arith.constant 0 : i32
    return %c0_i32, %c0_i32_0 : i32, i32
  }
  func.func @transform_2(%arg0: i32) -> (i32, i32) {
    %c0_i32 = arith.constant 0 : i32
    %c0_i32_0 = arith.constant 0 : i32
    %c0_i32_1 = arith.constant 0 : i32
    return %c0_i32, %c0_i32_0 : i32, i32
  }
  func.func @transform_3(%arg0: i32) -> (i32, i32) {
    %c0_i32 = arith.constant 0 : i32
    %c0_i32_0 = arith.constant 0 : i32
    %c0_i32_1 = arith.constant 0 : i32
    return %c0_i32, %c0_i32_0 : i32, i32
  }
  func.func @transform_4(%arg0: i32) -> (i32, i32) {
    %c0_i32 = arith.constant 0 : i32
    %c0_i32_0 = arith.constant 0 : i32
    %c0_i32_1 = arith.constant 0 : i32
    return %c0_i32, %c0_i32_0 : i32, i32
  }
  func.func @transform_5(%arg0: i32) -> (i32, i32) {
    %c0_i32 = arith.constant 0 : i32
    %c0_i32_0 = arith.constant 0 : i32
    return %arg0, %c0_i32 : i32, i32
  }
}

</mosaic_0001>

<llo_original>
// kernel: tpu_custom_call.1
$region0: #{tpu_custom_call.1}
  #allocation0 [shape = 'u32[]', space=smem, size = 0x4, offset = 0x4, fixed_abs, tag = 'smem constant byte address 0x4 - core index']
  #allocation1 [shape = 'u32[72,128]{1,0:T(1,128)}', space=vmem, size = 0x9000, scoped, tag = 'internal scratch']
  %s0 = inlined_call_operand.vmem [shape: f32[32,48], index: 0, kind: input, shape index: {}]
  %s1 = inlined_call_operand.vmem [shape: bf16[48,16], index: 1, kind: input, shape index: {}]
  %s2 = inlined_call_operand.vmem [shape: f32[1,16], index: 2, kind: input, shape index: {}]
  %s3 = inlined_call_operand.vmem [shape: f32[1,16], index: 3, kind: input, shape index: {}]
  %s4 = inlined_call_operand.vmem [shape: f32[1,16], index: 4, kind: input, shape index: {}]
  %s5 = inlined_call_operand.vmem [shape: f32[32,16], index: 5, kind: output, shape index: {}]
  %s6 = sld [smem:[#allocation0]]
  $region30: #{tpu_custom_call.1} parent=0
    _
  %s8 = ssub.s32 1, %s6
  %s9 = scalar_select 0, %s8, %s6
  // Predicated region
  $region2: #{tpu_custom_call.1} parent=0 // pred_check
    _
  $region3: #{tpu_custom_call.1} parent=0 // pred_check_branch
    %11 = sbr.rel (0) target = $region5
  $region4: #{tpu_custom_call.1} parent=0 // pred_region
    _
  $region5: #{tpu_custom_call.1} parent=0 // pred_fallthru
    _
  // Predicated region
  $region6: #{tpu_custom_call.1} parent=0 // pred_check
    _
  $region7: #{tpu_custom_call.1} parent=0 // pred_check_branch
    %13 = sbr.rel (0) target = $region9
  $region8: #{tpu_custom_call.1} parent=0 // pred_region
    _
  $region9: #{tpu_custom_call.1} parent=0 // pred_fallthru
    _
  // Predicated region
  $region10: #{tpu_custom_call.1} parent=0 // pred_check
    _
  $region11: #{tpu_custom_call.1} parent=0 // pred_check_branch
    %15 = sbr.rel (0) target = $region13
  $region12: #{tpu_custom_call.1} parent=0 // pred_region
    _
  $region13: #{tpu_custom_call.1} parent=0 // pred_fallthru
    _
  // Predicated region
  $region14: #{tpu_custom_call.1} parent=0 // pred_check
    _
  $region15: #{tpu_custom_call.1} parent=0 // pred_check_branch
    %17 = sbr.rel (0) target = $region17
  $region16: #{tpu_custom_call.1} parent=0 // pred_region
    _
  $region17: #{tpu_custom_call.1} parent=0 // pred_fallthru
    _
  // Predicated region
  $region18: #{tpu_custom_call.1} parent=0 // pred_check
    _
  $region19: #{tpu_custom_call.1} parent=0 // pred_check_branch
    %19 = sbr.rel (0) target = $region21
  $region20: #{tpu_custom_call.1} parent=0 // pred_region
    _
  $region21: #{tpu_custom_call.1} parent=0 // pred_fallthru
    _
  %v21 = vld [vmem:[%s0] sm:$0xff]
  %v22 = vld [vmem:[%s0 + $0x8] sm:$0xff]
  %v23 = vld [vmem:[%s0 + $0x10] sm:$0xff]
  %v24 = vld [vmem:[%s0 + $0x18] sm:$0xff]
  %v25 = vpack.c.bf16 %v22, %v21
  %v26 = vpack.c.bf16 %v24, %v23
  %v27 = vld [vmem:[%s1] sm:$0xf]
  %v28 = vld [vmem:[%s1 + $0x4] sm:$0xf]
  %v29 = vld [vmem:[%s1 + $0x8] sm:$0xf]
  %v30 = vld [vmem:[%s1 + $0xc] sm:$0xf]
  %v31 = vld [vmem:[%s1 + $0x10] sm:$0xf]
  %v32 = vld [vmem:[%s1 + $0x14] sm:$0xf]
  %v33 = vld [vmem:[%s2] sm:$0x1]
  %v35 = vperm.slane %v33, 0
  %v43 = vunpack.c.l.b16 %v27
  %v44 = vunpack.c.l.b16 %v28
  %v45 = vunpack.c.l.b16 %v29
  %v46 = vunpack.c.l.b16 %v30
  %v47 = vunpack.c.l.b16 %v31
  %v48 = vunpack.c.l.b16 %v32
  %v49 = vpack.c.b16 %v44, %v43
  %v50 = vpack.c.b16 %v46, %v45
  %v51 = vpack.c.b16 %v48, %v47
  %vm55 = vcmask 392192
  %v57 = vsel %vm55, %v25, 0
  %v60 = vsel %vm55, %v26, 0
  %62 = vmatpush.bf16.msra.mxu0 0
  %63 = vmatpush.bf16.msra.mxu0 0
  %64 = vmatpush.bf16.msra.mxu0 0
  %65 = vmatpush.bf16.msra.mxu0 0
  %66 = vmatpush.bf16.msra.mxu0 0
  %67 = vmatpush.bf16.msra.mxu0 %v51
  %68 = vmatpush.bf16.msra.mxu0 %v50
  %69 = vmatpush.bf16.msra.mxu0 %v49
  %70 = vmatmul.bf16.gmra.mxu0 %v57
  %v71 = vpop.f32.mrf.mxu0
  %v72 = vadd.f32 %v35, %v71
  %v73 = vpop.f32.mrf.mxu0
  %v74 = vadd.f32 %v35, %v73
  %75 = vmatmul.bf16.gmra.mxu0 %v60
  %v76 = vpop.f32.mrf.mxu0
  %v77 = vadd.f32 %v35, %v76
  %v78 = vpop.f32.mrf.mxu0
  %v79 = vadd.f32 %v35, %v78
  %80 = vdwg.mxu0
  %vm81 = vcmask 130048
  %v82 = vsel %vm81, %v72, 0.0
  %83 = vadd.xlane.f32.xlu0 %v82
  %v84 = vpop.xlane.xlu0 %83
  %v85 = vsel %vm81, %v74, 0.0
  %86 = vadd.xlane.f32.xlu0 %v85
  %v87 = vpop.xlane.xlu0 %86
  %v88 = vsel %vm81, %v77, 0.0
  %89 = vadd.xlane.f32.xlu0 %v88
  %v90 = vpop.xlane.xlu0 %89
  %v91 = vsel %vm81, %v79, 0.0
  %92 = vadd.xlane.f32.xlu0 %v91
  %v93 = vpop.xlane.xlu0 %92
  %v94 = vrcp.pop 16.0
  %v95 = vmul.f32 16.0, %v94
  %v96 = vsub.f32 1.0, %v95
  %v97 = vmul.f32 %v94, %v96
  %v98 = vadd.f32 %v94, %v97
  %vm99 = vweird.f32 %v94
  %v100 = vsel %vm99, %v94, %v98
  %v101 = vmul.f32 %v84, %v100
  %v102 = vmul.f32 %v87, %v100
  %v103 = vmul.f32 %v90, %v100
  %v104 = vmul.f32 %v93, %v100
  %v105 = vsub.f32 %v72, %v101
  %v106 = vsub.f32 %v74, %v102
  %v107 = vsub.f32 %v77, %v103
  %v108 = vsub.f32 %v79, %v104
  %v109 = vmul.f32 %v105, %v105
  %v110 = vmul.f32 %v106, %v106
  %v111 = vmul.f32 %v107, %v107
  %v112 = vmul.f32 %v108, %v108
  %v113 = vsel %vm81, %v109, 0.0
  %114 = vadd.xlane.f32.xlu0 %v113
  %v115 = vpop.xlane.xlu0 %114
  %v116 = vsel %vm81, %v110, 0.0
  %117 = vadd.xlane.f32.xlu0 %v116
  %v118 = vpop.xlane.xlu0 %117
  %v119 = vsel %vm81, %v111, 0.0
  %120 = vadd.xlane.f32.xlu0 %v119
  %v121 = vpop.xlane.xlu0 %120
  %v122 = vsel %vm81, %v112, 0.0
  %123 = vadd.xlane.f32.xlu0 %v122
  %v124 = vpop.xlane.xlu0 %123
  %v125 = vmul.f32 %v115, %v100
  %v126 = vmul.f32 %v118, %v100
  %v127 = vmul.f32 %v121, %v100
  %v128 = vmul.f32 %v124, %v100
  %v129 = vadd.f32 %v125, 1e-05
  %v130 = vadd.f32 %v126, 1e-05
  %v131 = vadd.f32 %v127, 1e-05
  %v132 = vadd.f32 %v128, 1e-05
  %v133 = vrsqrt.pop %v129
  %v134 = vmul.f32 %v133, %v129
  %v135 = vmul.f32 %v134, %v133
  %v136 = vmul.f32 0.5, %v135
  %v137 = vsub.f32 1.5, %v136
  %v138 = vmul.f32 %v133, %v137
  %vm139 = vweird.f32 %v129
  %vm140 = vweird.f32 %v133
  %vm141 = vmor %vm139, %vm140
  %v142 = vsel %vm141, %v133, %v138
  %v143 = vrsqrt.pop %v130
  %v144 = vmul.f32 %v143, %v130
  %v145 = vmul.f32 %v144, %v143
  %v146 = vmul.f32 0.5, %v145
  %v147 = vsub.f32 1.5, %v146
  %v148 = vmul.f32 %v143, %v147
  %vm149 = vweird.f32 %v130
  %vm150 = vweird.f32 %v143
  %vm151 = vmor %vm149, %vm150
  %v152 = vsel %vm151, %v143, %v148
  %v153 = vrsqrt.pop %v131
  %v154 = vmul.f32 %v153, %v131
  %v155 = vmul.f32 %v154, %v153
  %v156 = vmul.f32 0.5, %v155
  %v157 = vsub.f32 1.5, %v156
  %v158 = vmul.f32 %v153, %v157
  %vm159 = vweird.f32 %v131
  %vm160 = vweird.f32 %v153
  %vm161 = vmor %vm159, %vm160
  %v162 = vsel %vm161, %v153, %v158
  %v163 = vrsqrt.pop %v132
  %v164 = vmul.f32 %v163, %v132
  %v165 = vmul.f32 %v164, %v163
  %v166 = vmul.f32 0.5, %v165
  %v167 = vsub.f32 1.5, %v166
  %v168 = vmul.f32 %v163, %v167
  %vm169 = vweird.f32 %v132
  %vm170 = vweird.f32 %v163
  %vm171 = vmor %vm169, %vm170
  %v172 = vsel %vm171, %v163, %v168
  %v173 = vmul.f32 %v105, %v142
  %v174 = vmul.f32 %v106, %v152
  %v175 = vmul.f32 %v107, %v162
  %v176 = vmul.f32 %v108, %v172
  %v177 = vld [vmem:[%s3] sm:$0x1]
  %v179 = vperm.slane %v177, 0
  %v181 = vmul.f32 %v173, %v179
  %v182 = vmul.f32 %v174, %v179
  %v183 = vmul.f32 %v175, %v179
  %v184 = vmul.f32 %v176, %v179
  %v185 = vld [vmem:[%s4] sm:$0x1]
  %v187 = vperm.slane %v185, 0
  %v189 = vadd.f32 %v181, %v187
  %v190 = vadd.f32 %v182, %v187
  %v191 = vadd.f32 %v183, %v187
  %v192 = vadd.f32 %v184, %v187
  %193 = vst.msk [vmem:[%s5] sm:$0xff] %vm81, %v189
  %194 = vst.msk [vmem:[%s5 + $0x8] sm:$0xff] %vm81, %v190
  %195 = vst.msk [vmem:[%s5 + $0x10] sm:$0xff] %vm81, %v191
  %196 = vst.msk [vmem:[%s5 + $0x18] sm:$0xff] %vm81, %v192
  // Predicated region
  $region22: #{tpu_custom_call.1} parent=0 // pred_check
    _
  $region23: #{tpu_custom_call.1} parent=0 // pred_check_branch
    %198 = sbr.rel (0) target = $region25
  $region24: #{tpu_custom_call.1} parent=0 // pred_region
    _
  $region25: #{tpu_custom_call.1} parent=0 // pred_fallthru
    _
  // Predicated region
  $region26: #{tpu_custom_call.1} parent=0 // pred_check
    _
  $region27: #{tpu_custom_call.1} parent=0 // pred_check_branch
    %200 = sbr.rel (0) target = $region29
  $region28: #{tpu_custom_call.1} parent=0 // pred_region
    _
  $region29: #{tpu_custom_call.1} parent=0 // pred_fallthru
    _

</llo_original>
